<compile_context>
chip_gen: v7x
topology: tpu7x:2x2x1
jax: 0.10.0
libtpu: 0.0.40
codegen_flags: <defaults>
</compile_context>

<pallas_src>
import functools

import jax
import jax.numpy as jnp
from jax.experimental import pallas as pl
from jax.experimental.pallas import tpu as pltpu

LN_EPS = 1e-5
BN_EPS = 1e-5


def _gcb_kernel(feat_ref, wconv_ref, bnb_ref, w1t_ref, gamma_ref, beta_ref,
                w2t_ref, y_ref, m_sc, l_sc, acc_sc, *, n_total, tn, ragged_n):
    """Fused attention-pooling + MLP for `tb` batch elements, online over N chunks.

    feat_ref : (tb, C, tn) VMEM  feature chunk, native dtype/layout (N on lanes)
    wconv_ref: (1, 1, C)   VMEM  1x1-conv weight with BN scale folded in
    bnb_ref  : (1,)        SMEM  folded BN bias (single conv out-channel)
    w1t/w2t  : (C, C)      VMEM  fc weights (transposed), VMEM-resident across steps
    gamma/beta:(1, C)      VMEM  LayerNorm affine
    y_ref    : (1, tb, C)  VMEM  final per-batch output rows (written on last N step)
    m/l/acc  : scratch     f32   online-softmax running max / denom / weighted sum
    """
    ni = pl.program_id(1)
    tb = feat_ref.shape[0]
    c = feat_ref.shape[1]

    @pl.when(ni == 0)
    def _():
        m_sc[...] = jnp.full_like(m_sc, -jnp.inf)
        l_sc[...] = jnp.zeros_like(l_sc)
        acc_sc[...] = jnp.zeros_like(acc_sc)

    x = feat_ref[...]                                                   # (tb, C, tn)

    # --- 1x1 conv (out-ch = 1) on the MXU, folded BN bias, ReLU ------------
    wb = jnp.broadcast_to(wconv_ref[...], (tb, 1, c))                   # (tb, 1, C)
    logits = jax.lax.dot_general(
        wb, x,
        dimension_numbers=(((2,), (1,)), ((0,), (0,))),
        preferred_element_type=jnp.float32)                             # (tb, 1, tn)
    logits = jnp.maximum(logits + bnb_ref[0], 0.0)

    if ragged_n:
        lane = jax.lax.broadcasted_iota(jnp.int32, logits.shape, 2)
        valid = (ni * tn + lane) < n_total                              # (tb, 1, tn)
        logits = jnp.where(valid, logits, -jnp.inf)
        x = jnp.where(valid, x, jnp.zeros_like(x))

    # --- online softmax over the point axis (lane axis) --------------------
    m_prev = m_sc[...]                                                  # (tb, 1, 1)
    m_new = jnp.maximum(m_prev, jnp.max(logits, axis=-1, keepdims=True))
    alpha = jnp.exp(m_prev - m_new)                                     # (tb, 1, 1)
    p = jnp.exp(logits - m_new)                                         # (tb, 1, tn)
    l_sc[...] = alpha * l_sc[...] + jnp.sum(p, axis=-1, keepdims=True)

    # --- pooling on the MXU: acc[b, 0, c] += sum_n p[b, 0, n] * x[b, c, n] --
    acc_sc[...] = alpha * acc_sc[...] + jax.lax.dot_general(
        p.astype(x.dtype), x,
        dimension_numbers=(((2,), (2,)), ((0,), (0,))),
        preferred_element_type=jnp.float32)                             # (tb, 1, C)
    m_sc[...] = m_new

    # --- finalize: normalize + fc1 -> LayerNorm -> ReLU -> fc2 --------------
    @pl.when(ni == pl.num_programs(1) - 1)
    def _():
        # Exact divide: the kernel is HBM-bound, so the VPU/EUP cost is free.
        g = (acc_sc[...] / l_sc[...]).reshape(tb, c)                    # (tb, C)
        h = jnp.dot(g, w1t_ref[...], preferred_element_type=jnp.float32)
        mu = jnp.mean(h, axis=-1, keepdims=True)
        var = jnp.mean((h - mu) ** 2, axis=-1, keepdims=True)
        h = (h - mu) * jax.lax.rsqrt(var + LN_EPS)
        h = h * gamma_ref[...] + beta_ref[...]
        h = jnp.maximum(h, 0.0)
        y = jnp.dot(h, w2t_ref[...], preferred_element_type=jnp.float32)
        y_ref[...] = y[None, :, :].astype(y_ref.dtype)                  # (1, tb, C)


def _vmem_limit_and_budget():
    """Generation-aware scoped-VMEM limit and feature-tile byte budget."""
    try:
        cap = int(pltpu.get_tpu_info().vmem_capacity_bytes)
    except Exception:                                   # pragma: no cover
        cap = 64 << 20                                  # conservative (v7x per-TC)
    limit = min(cap * 3 // 4, 96 << 20)                 # v5e/v6e: 96 MiB, v7x: 48 MiB
    budget = min(limit // 2, 40 << 20)                  # double-buffered feature slab share
    return limit, budget


def _pick_tiles(B, C, N, itemsize, budget_bytes):
    """Choose (tb, tn): batch elements and points per grid step."""
    lane = 128
    per_batch_full = 2 * C * N * itemsize                # double-buffered, full point axis
    if per_batch_full <= budget_bytes or N <= lane:
        tn = N
        tb = max(1, min(B, budget_bytes // max(per_batch_full, 1)))
    else:
        # Flash-style N tiling: lane-aligned chunks, single HBM pass.
        tn_cap = budget_bytes // (2 * C * itemsize)
        tn = min(max(lane, (tn_cap // lane) * lane), (N // lane) * lane)
        tb = max(1, min(B, budget_bytes // (2 * C * tn * itemsize)))
    while B % tb:
        tb -= 1   # TODO(synk): support a ragged last batch tile instead of shrinking tb.
    # Keep >= 2 pipelined grid steps when the whole problem would otherwise be one step
    # (otherwise the feature DMA is fully exposed and the 2-TC split gets nothing).
    if B > 1 and (B // tb) * pl.cdiv(N, tn) < 2:
        tb = max(1, B // 2)
        while B % tb:
            tb -= 1
    return tb, tn


def global_context_block(feature_nchw, params):
    """feature_nchw: (B, C, N, 1) -> (B, C, N, 1)."""
    B, C, N, W = feature_nchw.shape
    assert W == 1
    # Drop the trailing singleton dim: layout-preserving, no HBM transpose, native dtype.
    x = feature_nchw.reshape(B, C, N)
    in_dtype = x.dtype

    # Fold eval-mode BatchNorm into the conv weight / a scalar bias.
    bn_scale = params["bn_gamma"] / jnp.sqrt(params["bn_var"] + BN_EPS)
    wconv_eff = (params["conv_w"] * bn_scale).reshape(1, 1, C).astype(in_dtype)
    bn_bias = jnp.reshape(params["bn_beta"] - params["bn_mean"] * bn_scale,
                          (1,)).astype(jnp.float32)

    w1t = params["w1"].T.astype(jnp.float32)            # (C, C), y = x @ W^T
    w2t = params["w2"].T.astype(jnp.float32)
    gamma = params["ln_gamma"].reshape(1, C).astype(jnp.float32)
    beta = params["ln_beta"].reshape(1, C).astype(jnp.float32)

    vmem_limit, budget = _vmem_limit_and_budget()
    itemsize = jnp.dtype(in_dtype).itemsize
    tb, tn = _pick_tiles(B, C, N, itemsize, budget)
    gb = B // tb
    gn = pl.cdiv(N, tn)
    ragged_n = (N % tn) != 0

    kernel = functools.partial(_gcb_kernel, n_total=N, tn=tn, ragged_n=ragged_n)

    y = pl.pallas_call(
        kernel,
        out_shape=jax.ShapeDtypeStruct((gb, tb, C), in_dtype),
        grid_spec=pltpu.PrefetchScalarGridSpec(
            num_scalar_prefetch=0,
            grid=(gb, gn),
            in_specs=[
                pl.BlockSpec((tb, C, tn), lambda b, n: (b, 0, n)),       # features
                pl.BlockSpec((1, 1, C), lambda b, n: (0, 0, 0)),         # folded conv weight
                pl.BlockSpec(memory_space=pltpu.MemorySpace.SMEM),       # folded BN bias
                pl.BlockSpec((C, C), lambda b, n: (0, 0)),               # fc1^T
                pl.BlockSpec((1, C), lambda b, n: (0, 0)),               # ln gamma
                pl.BlockSpec((1, C), lambda b, n: (0, 0)),               # ln beta
                pl.BlockSpec((C, C), lambda b, n: (0, 0)),               # fc2^T
            ],
            out_specs=pl.BlockSpec((1, tb, C), lambda b, n: (b, 0, 0)),
            scratch_shapes=[
                pltpu.VMEM((tb, 1, 1), jnp.float32),                     # running max
                pltpu.VMEM((tb, 1, 1), jnp.float32),                     # running denom
                pltpu.VMEM((tb, 1, C), jnp.float32),                     # weighted-sum acc
            ],
        ),
        compiler_params=pltpu.CompilerParams(
            dimension_semantics=("parallel", "arbitrary"),
            vmem_limit_bytes=int(vmem_limit)),
    )(x, wconv_eff, bn_bias, w1t, gamma, beta, w2t)

    y = y.reshape(B, C)
    # Broadcast the global vector back over the N points.  This stays a lazy broadcast
    # that XLA fuses into the consumer; if this module's output is the final program
    # output it will materialize once (same as the PyTorch .repeat()).
    return jnp.broadcast_to(y[:, :, None, None], (B, C, N, 1))


def reference(feature_nchw, params):
    """Pure-JAX reference matching the PyTorch forward (BN in eval mode)."""
    x = feature_nchw[..., 0].astype(jnp.float32)                        # (B, C, N)
    B, C, N = x.shape
    z = jnp.einsum("bcn,c->bn", x, params["conv_w"])                    # 1x1 conv, 1 out-ch
    bn_scale = params["bn_gamma"] / jnp.sqrt(params["bn_var"] + BN_EPS)
    z = z * bn_scale + (params["bn_beta"] - params["bn_mean"] * bn_scale)
    z = jax.nn.relu(z)
    att = jax.nn.softmax(z, axis=1)                                     # over the N points
    g = jnp.einsum("bcn,bn->bc", x, att)                                # (B, C)
    h = g @ params["w1"].T
    mu = h.mean(-1, keepdims=True)
    var = ((h - mu) ** 2).mean(-1, keepdims=True)
    h = (h - mu) / jnp.sqrt(var + LN_EPS) * params["ln_gamma"] + params["ln_beta"]
    h = jax.nn.relu(h)
    y = h @ params["w2"].T
    return jnp.broadcast_to(y[:, :, None, None], (B, C, N, 1))


if __name__ == "__main__":
    B, C, N = 2, 32, 16            # batch, d_in, num_points (W == 1)

    key = jax.random.PRNGKey(0)
    k_feat, k_conv, k_w1, k_w2 = jax.random.split(key, 4)

    feature = jax.random.normal(k_feat, (B, C, N, 1), dtype=jnp.float32)

    params = {
        # Conv2d(d_in, 1, 1x1, bias=False because bn=True)
        "conv_w": jax.random.normal(k_conv, (C,), dtype=jnp.float32) * 0.1,
        # BatchNorm2d(1) default init (eval mode)
        "bn_gamma": jnp.float32(1.0),
        "bn_beta": jnp.float32(0.0),
        "bn_mean": jnp.float32(0.0),
        "bn_var": jnp.float32(1.0),
        # Linear(d_in, d_in, bias=False) x2
        "w1": jax.random.normal(k_w1, (C, C), dtype=jnp.float32) * 0.1,
        "w2": jax.random.normal(k_w2, (C, C), dtype=jnp.float32) * 0.1,
        # LayerNorm(d_in) default init
        "ln_gamma": jnp.ones((C,), dtype=jnp.float32),
        "ln_beta": jnp.zeros((C,), dtype=jnp.float32),
    }

    out = jax.block_until_ready(global_context_block(feature, params))
    ref = jax.block_until_ready(reference(feature, params))

    assert out.shape == (B, C, N, 1), out.shape
    err = float(jnp.max(jnp.abs(out - ref)))
    assert err < 2e-3, err
    print("KERNEL_OK")
</pallas_src>

<mosaic_0001>
module attributes {stable_mosaic.version = 11 : i64} {
  func.func @_gcb_kernel(%arg0: i32, %arg1: i32, %arg2: memref<1x32x16xf32, #tpu.memory_space<vmem>>, %arg3: memref<1x1x32xf32, #tpu.memory_space<vmem>>, %arg4: memref<1xf32, #tpu.memory_space<smem>>, %arg5: memref<32x32xf32, #tpu.memory_space<vmem>>, %arg6: memref<1x32xf32, #tpu.memory_space<vmem>>, %arg7: memref<1x32xf32, #tpu.memory_space<vmem>>, %arg8: memref<32x32xf32, #tpu.memory_space<vmem>>, %arg9: memref<1x1x32xf32, #tpu.memory_space<vmem>>, %arg10: memref<1x1x1xf32, #tpu.memory_space<vmem>>, %arg11: memref<1x1x1xf32, #tpu.memory_space<vmem>>, %arg12: memref<1x1x32xf32, #tpu.memory_space<vmem>>) attributes {dimension_semantics = [#tpu.dimension_semantics<parallel>, #tpu.dimension_semantics<arbitrary>], iteration_bounds = array<i64: 2, 1>, scalar_prefetch = 0 : i64, scratch_operands = 3 : i64, tpu.core_type = #tpu.core_type<tc>, window_params = [{transform_indices = @transform_0, window_bounds = array<i64: 1, 32, 16>}, {pipeline_mode = #tpu.pipeline_mode<synchronous>, transform_indices = @transform_1, window_bounds = array<i64: 1, 1, 32>}, {transform_indices = @transform_2, window_bounds = array<i64: 1>}, {pipeline_mode = #tpu.pipeline_mode<synchronous>, transform_indices = @transform_3, window_bounds = array<i64: 32, 32>}, {pipeline_mode = #tpu.pipeline_mode<synchronous>, transform_indices = @transform_4, window_bounds = array<i64: 1, 32>}, {pipeline_mode = #tpu.pipeline_mode<synchronous>, transform_indices = @transform_5, window_bounds = array<i64: 1, 32>}, {pipeline_mode = #tpu.pipeline_mode<synchronous>, transform_indices = @transform_6, window_bounds = array<i64: 32, 32>}, {transform_indices = @transform_7, window_bounds = array<i64: 1, 1, 32>}]} {
    %c0_i32 = arith.constant 0 : i32
    %0 = arith.cmpi eq, %arg1, %c0_i32 : i32
    %1 = arith.extui %0 : i1 to i32
    %c0_i32_0 = arith.constant 0 : i32
    %2 = arith.cmpi ne, %1, %c0_i32_0 : i32
    scf.if %2 {
      %cst_31 = arith.constant 0xFF800000 : f32
      %36 = vector.broadcast %cst_31 : f32 to vector<1x1x1xf32>
      %c0_32 = arith.constant 0 : index
      %c0_33 = arith.constant 0 : index
      %c0_34 = arith.constant 0 : index
      %37 = vector.load %arg10[%c0_32, %c0_33, %c0_34] : memref<1x1x1xf32, #tpu.memory_space<vmem>>, vector<1x1x1xf32>
      tpu.vector_store %arg10[%c0_32, %c0_33, %c0_34], %36 {strides = array<i32>} : memref<1x1x1xf32, #tpu.memory_space<vmem>>, vector<1x1x1xf32>,
      %cst_35 = arith.constant 0.000000e+00 : f32
      %38 = vector.broadcast %cst_35 : f32 to vector<1x1x1xf32>
      %c0_36 = arith.constant 0 : index
      %c0_37 = arith.constant 0 : index
      %c0_38 = arith.constant 0 : index
      %39 = vector.load %arg11[%c0_36, %c0_37, %c0_38] : memref<1x1x1xf32, #tpu.memory_space<vmem>>, vector<1x1x1xf32>
      tpu.vector_store %arg11[%c0_36, %c0_37, %c0_38], %38 {strides = array<i32>} : memref<1x1x1xf32, #tpu.memory_space<vmem>>, vector<1x1x1xf32>,
      %cst_39 = arith.constant 0.000000e+00 : f32
      %40 = vector.broadcast %cst_39 : f32 to vector<1x1x32xf32>
      %c0_40 = arith.constant 0 : index
      %c0_41 = arith.constant 0 : index
      %c0_42 = arith.constant 0 : index
      %41 = vector.load %arg12[%c0_40, %c0_41, %c0_42] : memref<1x1x32xf32, #tpu.memory_space<vmem>>, vector<1x1x32xf32>
      tpu.vector_store %arg12[%c0_40, %c0_41, %c0_42], %40 {strides = array<i32>} : memref<1x1x32xf32, #tpu.memory_space<vmem>>, vector<1x1x32xf32>,
    } else {
    }
    %c0 = arith.constant 0 : index
    %c0_1 = arith.constant 0 : index
    %c0_2 = arith.constant 0 : index
    %3 = vector.load %arg2[%c0, %c0_1, %c0_2] : memref<1x32x16xf32, #tpu.memory_space<vmem>>, vector<1x32x16xf32>
    %c0_3 = arith.constant 0 : index
    %c0_4 = arith.constant 0 : index
    %c0_5 = arith.constant 0 : index
    %4 = vector.load %arg3[%c0_3, %c0_4, %c0_5] : memref<1x1x32xf32, #tpu.memory_space<vmem>>, vector<1x1x32xf32>
    %cst = arith.constant dense<0.000000e+00> : vector<1x1x16xf32>
    %5 = tpu.matmul %4, %3, %cst {dimension_numbers = #tpu.dot_dimension_numbers<[2], [1], [1], [2], [0, 0, 0, 1, 1, 2], [0], [0]>} : vector<1x1x32xf32>, vector<1x32x16xf32>, vector<1x1x16xf32> -> vector<1x1x16xf32>
    %c0_6 = arith.constant 0 : index
    %6 = memref.load %arg4[%c0_6] : memref<1xf32, #tpu.memory_space<smem>>
    %7 = vector.broadcast %6 : f32 to vector<1x1x16xf32>
    %8 = arith.addf %5, %7 : vector<1x1x16xf32>
    %cst_7 = arith.constant 0.000000e+00 : f32
    %9 = vector.broadcast %cst_7 : f32 to vector<1x1x16xf32>
    %10 = arith.maximumf %8, %9 : vector<1x1x16xf32>
    %c0_8 = arith.constant 0 : index
    %c0_9 = arith.constant 0 : index
    %c0_10 = arith.constant 0 : index
    %11 = vector.load %arg10[%c0_8, %c0_9, %c0_10] : memref<1x1x1xf32, #tpu.memory_space<vmem>>, vector<1x1x1xf32>
    %cst_11 = arith.constant dense<0xFF800000> : vector<1x1xf32>
    %12 = vector.multi_reduction <maximumf>, %10, %cst_11 [2] : vector<1x1x16xf32> to vector<1x1xf32>
    %13 = vector.shape_cast %12 : vector<1x1xf32> to vector<1x1x1xf32>
    %14 = arith.maximumf %11, %13 : vector<1x1x1xf32>
    %15 = arith.subf %11, %14 : vector<1x1x1xf32>
    %16 = math.exp %15 : vector<1x1x1xf32>
    %17 = vector.broadcast %14 : vector<1x1x1xf32> to vector<1x1x16xf32>
    %18 = arith.subf %10, %17 : vector<1x1x16xf32>
    %19 = math.exp %18 : vector<1x1x16xf32>
    %c0_12 = arith.constant 0 : index
    %c0_13 = arith.constant 0 : index
    %c0_14 = arith.constant 0 : index
    %20 = vector.load %arg11[%c0_12, %c0_13, %c0_14] : memref<1x1x1xf32, #tpu.memory_space<vmem>>, vector<1x1x1xf32>
    %21 = arith.mulf %16, %20 : vector<1x1x1xf32>
    %cst_15 = arith.constant dense<0.000000e+00> : vector<1x1xf32>
    %22 = vector.multi_reduction <add>, %19, %cst_15 [2] : vector<1x1x16xf32> to vector<1x1xf32>
    %23 = vector.shape_cast %22 : vector<1x1xf32> to vector<1x1x1xf32>
    %24 = arith.addf %21, %23 : vector<1x1x1xf32>
    %c0_16 = arith.constant 0 : index
    %c0_17 = arith.constant 0 : index
    %c0_18 = arith.constant 0 : index
    %25 = vector.load %arg11[%c0_16, %c0_17, %c0_18] : memref<1x1x1xf32, #tpu.memory_space<vmem>>, vector<1x1x1xf32>
    tpu.vector_store %arg11[%c0_16, %c0_17, %c0_18], %24 {strides = array<i32>} : memref<1x1x1xf32, #tpu.memory_space<vmem>>, vector<1x1x1xf32>,
    %c0_19 = arith.constant 0 : index
    %c0_20 = arith.constant 0 : index
    %c0_21 = arith.constant 0 : index
    %26 = vector.load %arg12[%c0_19, %c0_20, %c0_21] : memref<1x1x32xf32, #tpu.memory_space<vmem>>, vector<1x1x32xf32>
    %27 = vector.broadcast %16 : vector<1x1x1xf32> to vector<1x1x32xf32>
    %28 = arith.mulf %27, %26 : vector<1x1x32xf32>
    %cst_22 = arith.constant dense<0.000000e+00> : vector<1x1x32xf32>
    %29 = tpu.matmul %19, %3, %cst_22 {dimension_numbers = #tpu.dot_dimension_numbers<[2], [2], [1], [1], [0, 0, 0, 1, 1, 1], [0], [0]>} : vector<1x1x16xf32>, vector<1x32x16xf32>, vector<1x1x32xf32> -> vector<1x1x32xf32>
    %30 = arith.addf %28, %29 : vector<1x1x32xf32>
    %c0_23 = arith.constant 0 : index
    %c0_24 = arith.constant 0 : index
    %c0_25 = arith.constant 0 : index
    %31 = vector.load %arg12[%c0_23, %c0_24, %c0_25] : memref<1x1x32xf32, #tpu.memory_space<vmem>>, vector<1x1x32xf32>
    tpu.vector_store %arg12[%c0_23, %c0_24, %c0_25], %30 {strides = array<i32>} : memref<1x1x32xf32, #tpu.memory_space<vmem>>, vector<1x1x32xf32>,
    %c0_26 = arith.constant 0 : index
    %c0_27 = arith.constant 0 : index
    %c0_28 = arith.constant 0 : index
    %32 = vector.load %arg10[%c0_26, %c0_27, %c0_28] : memref<1x1x1xf32, #tpu.memory_space<vmem>>, vector<1x1x1xf32>
    tpu.vector_store %arg10[%c0_26, %c0_27, %c0_28], %14 {strides = array<i32>} : memref<1x1x1xf32, #tpu.memory_space<vmem>>, vector<1x1x1xf32>,
    %c0_i32_29 = arith.constant 0 : i32
    %33 = arith.cmpi eq, %arg1, %c0_i32_29 : i32
    %34 = arith.extui %33 : i1 to i32
    %c0_i32_30 = arith.constant 0 : i32
    %35 = arith.cmpi ne, %34, %c0_i32_30 : i32
    scf.if %35 {
      %c0_31 = arith.constant 0 : index
      %c0_32 = arith.constant 0 : index
      %c0_33 = arith.constant 0 : index
      %36 = vector.load %arg12[%c0_31, %c0_32, %c0_33] : memref<1x1x32xf32, #tpu.memory_space<vmem>>, vector<1x1x32xf32>
      %c0_34 = arith.constant 0 : index
      %c0_35 = arith.constant 0 : index
      %c0_36 = arith.constant 0 : index
      %37 = vector.load %arg11[%c0_34, %c0_35, %c0_36] : memref<1x1x1xf32, #tpu.memory_space<vmem>>, vector<1x1x1xf32>
      %38 = vector.broadcast %37 : vector<1x1x1xf32> to vector<1x1x32xf32>
      %39 = arith.divf %36, %38 : vector<1x1x32xf32>
      %40 = vector.shape_cast %39 : vector<1x1x32xf32> to vector<1x32xf32>
      %c0_37 = arith.constant 0 : index
      %c0_38 = arith.constant 0 : index
      %41 = vector.load %arg5[%c0_37, %c0_38] : memref<32x32xf32, #tpu.memory_space<vmem>>, vector<32x32xf32>
      %cst_39 = arith.constant dense<0.000000e+00> : vector<1x32xf32>
      %42 = tpu.matmul %40, %41, %cst_39 {dimension_numbers = #tpu.dot_dimension_numbers<[1], [0], [0], [1], [0, 0, 1, 1], [], []>} : vector<1x32xf32>, vector<32x32xf32>, vector<1x32xf32> -> vector<1x32xf32>
      %cst_40 = arith.constant dense<0.000000e+00> : vector<1xf32>
      %43 = vector.multi_reduction <add>, %42, %cst_40 [1] : vector<1x32xf32> to vector<1xf32>
      %44 = vector.shape_cast %43 : vector<1xf32> to vector<1x1xf32>
      %cst_41 = arith.constant 3.200000e+01 : f32
      %45 = vector.broadcast %cst_41 : f32 to vector<1x1xf32>
      %46 = arith.divf %44, %45 : vector<1x1xf32>
      %47 = vector.broadcast %46 : vector<1x1xf32> to vector<1x32xf32>
      %48 = arith.subf %42, %47 : vector<1x32xf32>
      %49 = arith.mulf %48, %48 : vector<1x32xf32>
      %cst_42 = arith.constant dense<0.000000e+00> : vector<1xf32>
      %50 = vector.multi_reduction <add>, %49, %cst_42 [1] : vector<1x32xf32> to vector<1xf32>
      %51 = vector.shape_cast %50 : vector<1xf32> to vector<1x1xf32>
      %cst_43 = arith.constant 3.200000e+01 : f32
      %52 = vector.broadcast %cst_43 : f32 to vector<1x1xf32>
      %53 = arith.divf %51, %52 : vector<1x1xf32>
      %54 = vector.broadcast %46 : vector<1x1xf32> to vector<1x32xf32>
      %55 = arith.subf %42, %54 : vector<1x32xf32>
      %cst_44 = arith.constant 9.99999974E-6 : f32
      %56 = vector.broadcast %cst_44 : f32 to vector<1x1xf32>
      %57 = arith.addf %53, %56 : vector<1x1xf32>
      %58 = math.rsqrt %57 : vector<1x1xf32>
      %59 = vector.broadcast %58 : vector<1x1xf32> to vector<1x32xf32>
      %60 = arith.mulf %55, %59 : vector<1x32xf32>
      %c0_45 = arith.constant 0 : index
      %c0_46 = arith.constant 0 : index
      %61 = vector.load %arg6[%c0_45, %c0_46] : memref<1x32xf32, #tpu.memory_space<vmem>>, vector<1x32xf32>
      %62 = arith.mulf %60, %61 : vector<1x32xf32>
      %c0_47 = arith.constant 0 : index
      %c0_48 = arith.constant 0 : index
      %63 = vector.load %arg7[%c0_47, %c0_48] : memref<1x32xf32, #tpu.memory_space<vmem>>, vector<1x32xf32>
      %64 = arith.addf %62, %63 : vector<1x32xf32>
      %cst_49 = arith.constant 0.000000e+00 : f32
      %65 = vector.broadcast %cst_49 : f32 to vector<1x32xf32>
      %66 = arith.maximumf %64, %65 : vector<1x32xf32>
      %c0_50 = arith.constant 0 : index
      %c0_51 = arith.constant 0 : index
      %67 = vector.load %arg8[%c0_50, %c0_51] : memref<32x32xf32, #tpu.memory_space<vmem>>, vector<32x32xf32>
      %cst_52 = arith.constant dense<0.000000e+00> : vector<1x32xf32>
      %68 = tpu.matmul %66, %67, %cst_52 {dimension_numbers = #tpu.dot_dimension_numbers<[1], [0], [0], [1], [0, 0, 1, 1], [], []>} : vector<1x32xf32>, vector<32x32xf32>, vector<1x32xf32> -> vector<1x32xf32>
      %69 = vector.shape_cast %68 : vector<1x32xf32> to vector<1x1x32xf32>
      %c0_53 = arith.constant 0 : index
      %c0_54 = arith.constant 0 : index
      %c0_55 = arith.constant 0 : index
      %70 = vector.load %arg9[%c0_53, %c0_54, %c0_55] : memref<1x1x32xf32, #tpu.memory_space<vmem>>, vector<1x1x32xf32>
      tpu.vector_store %arg9[%c0_53, %c0_54, %c0_55], %69 {strides = array<i32>} : memref<1x1x32xf32, #tpu.memory_space<vmem>>, vector<1x1x32xf32>,
    } else {
    }
    return
  }
  func.func @transform_0(%arg0: i32, %arg1: i32) -> (i32, i32, i32) {
    %c0_i32 = arith.constant 0 : i32
    %c0_i32_0 = arith.constant 0 : i32
    return %arg0, %c0_i32, %arg1 : i32, i32, i32
  }
  func.func @transform_1(%arg0: i32, %arg1: i32) -> (i32, i32, i32) {
    %c0_i32 = arith.constant 0 : i32
    %c0_i32_0 = arith.constant 0 : i32
    %c0_i32_1 = arith.constant 0 : i32
    %c0_i32_2 = arith.constant 0 : i32
    return %c0_i32, %c0_i32_0, %c0_i32_1 : i32, i32, i32
  }
  func.func @transform_2(%arg0: i32, %arg1: i32) -> i32 {
    %c0_i32 = arith.constant 0 : i32
    %c0_i32_0 = arith.constant 0 : i32
    return %c0_i32 : i32
  }
  func.func @transform_3(%arg0: i32, %arg1: i32) -> (i32, i32) {
    %c0_i32 = arith.constant 0 : i32
    %c0_i32_0 = arith.constant 0 : i32
    %c0_i32_1 = arith.constant 0 : i32
    return %c0_i32, %c0_i32_0 : i32, i32
  }
  func.func @transform_4(%arg0: i32, %arg1: i32) -> (i32, i32) {
    %c0_i32 = arith.constant 0 : i32
    %c0_i32_0 = arith.constant 0 : i32
    %c0_i32_1 = arith.constant 0 : i32
    return %c0_i32, %c0_i32_0 : i32, i32
  }
  func.func @transform_5(%arg0: i32, %arg1: i32) -> (i32, i32) {
    %c0_i32 = arith.constant 0 : i32
    %c0_i32_0 = arith.constant 0 : i32
    %c0_i32_1 = arith.constant 0 : i32
    return %c0_i32, %c0_i32_0 : i32, i32
  }
  func.func @transform_6(%arg0: i32, %arg1: i32) -> (i32, i32) {
    %c0_i32 = arith.constant 0 : i32
    %c0_i32_0 = arith.constant 0 : i32
    %c0_i32_1 = arith.constant 0 : i32
    return %c0_i32, %c0_i32_0 : i32, i32
  }
  func.func @transform_7(%arg0: i32, %arg1: i32) -> (i32, i32, i32) {
    %c0_i32 = arith.constant 0 : i32
    %c0_i32_0 = arith.constant 0 : i32
    %c0_i32_1 = arith.constant 0 : i32
    return %arg0, %c0_i32, %c0_i32_0 : i32, i32, i32
  }
}

</mosaic_0001>

<llo_original>
// kernel: tpu_custom_call.1
$region0: #{tpu_custom_call.1}
  #allocation0 [shape = 'u32[]', space=smem, size = 0x4, offset = 0x4, fixed_abs, tag = 'smem constant byte address 0x4 - core index']
  #allocation1 [shape = 'u32[144,128]{1,0:T(1,128)}', space=vmem, size = 0x12000, scoped, tag = 'internal scratch']
  #allocation2 [shape = 'f32[1,1,1]{2,1,0:T(1,128)}', space=vmem, size = 0x200, scoped, tag = 'scratch operand']
  #allocation3 [shape = 'f32[1,1,1]{2,1,0:T(1,128)}', space=vmem, size = 0x200, scoped, tag = 'scratch operand']
  #allocation4 [shape = 'f32[1,1,32]{2,1,0:T(1,128)}', space=vmem, size = 0x200, scoped, tag = 'scratch operand']
  #allocation5 [shape = 'f32[1]{0:T(128)S(6)}', space=smem, size = 0x200, scoped, tag = 'scoped memory for tpu_custom_call.1']
  %s0 = inlined_call_operand.vmem [shape: f32[2,32,16], index: 0, kind: input, shape index: {}]
  %s1 = inlined_call_operand.vmem [shape: f32[1,1,32], index: 1, kind: input, shape index: {}]
  %s2 = inlined_call_operand.<no memory space> [shape: f32[1], index: 2, kind: input, shape index: {}]
  %s3 = inlined_call_operand.vmem [shape: f32[32,32], index: 3, kind: input, shape index: {}]
  %s4 = inlined_call_operand.vmem [shape: f32[1,32], index: 4, kind: input, shape index: {}]
  %s5 = inlined_call_operand.vmem [shape: f32[1,32], index: 5, kind: input, shape index: {}]
  %s6 = inlined_call_operand.vmem [shape: f32[32,32], index: 6, kind: input, shape index: {}]
  %s7 = inlined_call_operand.hbm [shape: f32[2,1,32], index: 7, kind: output, shape index: {}]
  %s8 = sld [smem:[#allocation0]]
  $region69: #{tpu_custom_call.1} parent=0
    _
  %s10 = ssub.s32 1, %s8
  %s11 = scalar_select 0, %s10, %s8
  %12 = sst [smem:[#allocation5]] %s2
  $region1: #{tpu_custom_call.1} parent=0
    #allocation6 [shape = 'u8[1024]{0}', space=vmem, size = 0x400, scoped, tag = 'output window, operand 0']
    #allocation7 [shape = 's32[2]{0}', space=sflag, size = 0x8, scoped, tag = 'scoped memory for tpu_custom_call.1']
    %13 = vsyncpa [#allocation7], 0
    %s14 = scalar_lea.sflag [#allocation7], 1
    %15 = vsyncpa %s14, 0
    loop: start=0, step=1, limit=4
    $region2: #{tpu_custom_call.1} parent=1 // loop_pre_header
      _
    $region3: #{tpu_custom_call.1} parent=1 // loop_header
      %s17 = sphi 0, %s21
      %p18 = scmp.ge.s32.totalorder %s17, 4
      %s24 = sphi 0, %s36
      %s25 = sphi 0, %s32
      %s26 = sphi 0, %s24
      %s27 = sphi 0, %s25
      %s28 = sphi 0, %s26
      %s29 = sphi 0, %s27
      %s41 = sphi 0, %s43
      %s44 = sphi 0, %s41
      %s45 = sphi 0, %s44
      %s61 = sphi 0, %s45
      %s65 = sphi 0, %s65
      %s67 = sphi 0, %s65
      %s68 = sphi 0, %s67
      %s82 = sphi 0, %s68
      %s86 = sphi 0, %s86
      %s88 = sphi 0, %s86
      %s89 = sphi 0, %s88
      %s103 = sphi 0, %s89
      %s107 = sphi 0, %s107
      %s109 = sphi 0, %s107
      %s110 = sphi 0, %s109
      %s124 = sphi 0, %s110
      %s128 = sphi 0, %s128
      %s130 = sphi 0, %s128
      %s131 = sphi 0, %s130
      %s145 = sphi 0, %s131
      %s149 = sphi 0, %s149
      %s151 = sphi 0, %s149
      %s152 = sphi 0, %s151
      %s166 = sphi 0, %s152
      %s170 = sphi 0, %s170
      %s172 = sphi 0, %s170
      %s173 = sphi 0, %s172
      %s187 = sphi 0, %s173
      %s193 = sphi 0, %s195
      %s196 = sphi 0, %s193
      %s197 = sphi 0, %s196
      %s213 = sphi 0, %s197
    $region4: #{tpu_custom_call.1} parent=1 // loop_header_branch
      %20 = sbr.rel (%p18) target = $region8
    $region5: #{tpu_custom_call.1} parent=1 // loop_body
      %s22 = ssub.s32 %s17, 1
      %s23 = ssub.s32 %s17, 2
      %s30 = sadd.s32 1, %s25
      %p31 = scmp.ge.s32.totalorder %s30, 1
      %s32 = scalar_select %p31, 0, %s30
      %s33 = sadd.s32 1, %s24
      %s34 = scalar_select %p31, %s33, %s24
      %p35 = scmp.ge.s32.totalorder %s34, 2
      %s36 = scalar_select %p35, 0, %s34
      %s37 = ssub.s32 %s24, %s36
      %s38 = ssub.s32 %s25, %s32
      %s39 = sor.u32 %s37, %s38
      %p40 = scmp.eq.s32.totalorder %s39, 0
      %s42 = sadd.s32 %s41, 1
      %s43 = scalar_select %p40, %s41, %s42
      %p46 = pneg %p40
      %p47 = scmp.eq.s32.totalorder %s17, 1
      %p48 = por %p46, %p47
      %p49 = scmp.ne.s32.totalorder %s41, %s44
      %p50 = scmp.eq.s32.totalorder %s17, 0
      %p51 = por %p49, %p50
      %p52 = scmp.ne.s32.totalorder %s41, %s44
      %p53 = scmp.eq.s32.totalorder %s22, 1
      %p54 = por %p52, %p53
      %p55 = scmp.ne.s32.totalorder %s44, %s45
      %p56 = scmp.eq.s32.totalorder %s22, 0
      %p57 = por %p55, %p56
      %p58 = scmp.ne.s32.totalorder %s44, %s45
      %p59 = scmp.eq.s32.totalorder %s23, 1
      %p60 = por %p58, %p59
      %p62 = scmp.ne.s32.totalorder %s45, %s61
      %p63 = scmp.eq.s32.totalorder %s23, 0
      %p64 = por %p62, %p63
      %s66 = sadd.s32 %s65, 1
      %p69 = scmp.eq.s32.totalorder %s17, 1
      %p70 = scmp.ne.s32.totalorder %s65, %s67
      %p71 = scmp.eq.s32.totalorder %s17, 0
      %p72 = por %p70, %p71
      %p73 = scmp.ne.s32.totalorder %s65, %s67
      %p74 = scmp.eq.s32.totalorder %s22, 1
      %p75 = por %p73, %p74
      %p76 = scmp.ne.s32.totalorder %s67, %s68
      %p77 = scmp.eq.s32.totalorder %s22, 0
      %p78 = por %p76, %p77
      %p79 = scmp.ne.s32.totalorder %s67, %s68
      %p80 = scmp.eq.s32.totalorder %s23, 1
      %p81 = por %p79, %p80
      %p83 = scmp.ne.s32.totalorder %s68, %s82
      %p84 = scmp.eq.s32.totalorder %s23, 0
      %p85 = por %p83, %p84
      %s87 = sadd.s32 %s86, 1
      %p90 = scmp.eq.s32.totalorder %s17, 1
      %p91 = scmp.ne.s32.totalorder %s86, %s88
      %p92 = scmp.eq.s32.totalorder %s17, 0
      %p93 = por %p91, %p92
      %p94 = scmp.ne.s32.totalorder %s86, %s88
      %p95 = scmp.eq.s32.totalorder %s22, 1
      %p96 = por %p94, %p95
      %p97 = scmp.ne.s32.totalorder %s88, %s89
      %p98 = scmp.eq.s32.totalorder %s22, 0
      %p99 = por %p97, %p98
      %p100 = scmp.ne.s32.totalorder %s88, %s89
      %p101 = scmp.eq.s32.totalorder %s23, 1
      %p102 = por %p100, %p101
      %p104 = scmp.ne.s32.totalorder %s89, %s103
      %p105 = scmp.eq.s32.totalorder %s23, 0
      %p106 = por %p104, %p105
      %s108 = sadd.s32 %s107, 1
      %p111 = scmp.eq.s32.totalorder %s17, 1
      %p112 = scmp.ne.s32.totalorder %s107, %s109
      %p113 = scmp.eq.s32.totalorder %s17, 0
      %p114 = por %p112, %p113
      %p115 = scmp.ne.s32.totalorder %s107, %s109
      %p116 = scmp.eq.s32.totalorder %s22, 1
      %p117 = por %p115, %p116
      %p118 = scmp.ne.s32.totalorder %s109, %s110
      %p119 = scmp.eq.s32.totalorder %s22, 0
      %p120 = por %p118, %p119
      %p121 = scmp.ne.s32.totalorder %s109, %s110
      %p122 = scmp.eq.s32.totalorder %s23, 1
      %p123 = por %p121, %p122
      %p125 = scmp.ne.s32.totalorder %s110, %s124
      %p126 = scmp.eq.s32.totalorder %s23, 0
      %p127 = por %p125, %p126
      %s129 = sadd.s32 %s128, 1
      %p132 = scmp.eq.s32.totalorder %s17, 1
      %p133 = scmp.ne.s32.totalorder %s128, %s130
      %p134 = scmp.eq.s32.totalorder %s17, 0
      %p135 = por %p133, %p134
      %p136 = scmp.ne.s32.totalorder %s128, %s130
      %p137 = scmp.eq.s32.totalorder %s22, 1
      %p138 = por %p136, %p137
      %p139 = scmp.ne.s32.totalorder %s130, %s131
      %p140 = scmp.eq.s32.totalorder %s22, 0
      %p141 = por %p139, %p140
      %p142 = scmp.ne.s32.totalorder %s130, %s131
      %p143 = scmp.eq.s32.totalorder %s23, 1
      %p144 = por %p142, %p143
      %p146 = scmp.ne.s32.totalorder %s131, %s145
      %p147 = scmp.eq.s32.totalorder %s23, 0
      %p148 = por %p146, %p147
      %s150 = sadd.s32 %s149, 1
      %p153 = scmp.eq.s32.totalorder %s17, 1
      %p154 = scmp.ne.s32.totalorder %s149, %s151
      %p155 = scmp.eq.s32.totalorder %s17, 0
      %p156 = por %p154, %p155
      %p157 = scmp.ne.s32.totalorder %s149, %s151
      %p158 = scmp.eq.s32.totalorder %s22, 1
      %p159 = por %p157, %p158
      %p160 = scmp.ne.s32.totalorder %s151, %s152
      %p161 = scmp.eq.s32.totalorder %s22, 0
      %p162 = por %p160, %p161
      %p163 = scmp.ne.s32.totalorder %s151, %s152
      %p164 = scmp.eq.s32.totalorder %s23, 1
      %p165 = por %p163, %p164
      %p167 = scmp.ne.s32.totalorder %s152, %s166
      %p168 = scmp.eq.s32.totalorder %s23, 0
      %p169 = por %p167, %p168
      %s171 = sadd.s32 %s170, 1
      %p174 = scmp.eq.s32.totalorder %s17, 1
      %p175 = scmp.ne.s32.totalorder %s170, %s172
      %p176 = scmp.eq.s32.totalorder %s17, 0
      %p177 = por %p175, %p176
      %p178 = scmp.ne.s32.totalorder %s170, %s172
      %p179 = scmp.eq.s32.totalorder %s22, 1
      %p180 = por %p178, %p179
      %p181 = scmp.ne.s32.totalorder %s172, %s173
      %p182 = scmp.eq.s32.totalorder %s22, 0
      %p183 = por %p181, %p182
      %p184 = scmp.ne.s32.totalorder %s172, %s173
      %p185 = scmp.eq.s32.totalorder %s23, 1
      %p186 = por %p184, %p185
      %p188 = scmp.ne.s32.totalorder %s173, %s187
      %p189 = scmp.eq.s32.totalorder %s23, 0
      %p190 = por %p188, %p189
      %s191 = ssub.s32 %s24, %s36
      %p192 = scmp.eq.s32.totalorder %s191, 0
      %s194 = sadd.s32 %s193, 1
      %s195 = scalar_select %p192, %s193, %s194
      %p198 = pneg %p192
      %p199 = scmp.eq.s32.totalorder %s17, 1
      %p200 = por %p198, %p199
      %p201 = scmp.ne.s32.totalorder %s193, %s196
      %p202 = scmp.eq.s32.totalorder %s17, 0
      %p203 = por %p201, %p202
      %p204 = scmp.ne.s32.totalorder %s193, %s196
      %p205 = scmp.eq.s32.totalorder %s22, 1
      %p206 = por %p204, %p205
      %p207 = scmp.ne.s32.totalorder %s196, %s197
      %p208 = scmp.eq.s32.totalorder %s22, 0
      %p209 = por %p207, %p208
      %p210 = scmp.ne.s32.totalorder %s196, %s197
      %p211 = scmp.eq.s32.totalorder %s23, 1
      %p212 = por %p210, %p211
      %p214 = scmp.ne.s32.totalorder %s197, %s213
      %p215 = scmp.eq.s32.totalorder %s23, 0
      %p216 = por %p214, %p215
      %p217 = scmp.le.s32.totalorder 1, %s17
      %p218 = scmp.lt.s32.totalorder %s17, 3
      %p219 = pnand %p217, %p218
      %p220 = pneg %p219
      // Predicated region
      $region9: #{tpu_custom_call.1} parent=5 // pred_check
        _
      $region10: #{tpu_custom_call.1} parent=5 // pred_check_branch
        %222 = sbr.rel (%p219) target = $region12
      $region11: #{tpu_custom_call.1} parent=5 // pred_region
        %s223 = ssub.s32 %s17, 1
        // Predicated region
        $region13: #{tpu_custom_call.1} parent=11 // pred_check
          %p224 = pneg %p78
        $region14: #{tpu_custom_call.1} parent=11 // pred_check_branch
          %226 = sbr.rel (%p224) target = $region16
        $region15: #{tpu_custom_call.1} parent=11 // pred_region
          _
        $region16: #{tpu_custom_call.1} parent=11 // pred_fallthru
          _
        // Predicated region
        $region17: #{tpu_custom_call.1} parent=11 // pred_check
          %p227 = pneg %p99
        $region18: #{tpu_custom_call.1} parent=11 // pred_check_branch
          %229 = sbr.rel (%p227) target = $region20
        $region19: #{tpu_custom_call.1} parent=11 // pred_region
          _
        $region20: #{tpu_custom_call.1} parent=11 // pred_fallthru
          _
        // Predicated region
        $region21: #{tpu_custom_call.1} parent=11 // pred_check
          %p230 = pneg %p120
        $region22: #{tpu_custom_call.1} parent=11 // pred_check_branch
          %232 = sbr.rel (%p230) target = $region24
        $region23: #{tpu_custom_call.1} parent=11 // pred_region
          _
        $region24: #{tpu_custom_call.1} parent=11 // pred_fallthru
          _
        // Predicated region
        $region25: #{tpu_custom_call.1} parent=11 // pred_check
          %p233 = pneg %p141
        $region26: #{tpu_custom_call.1} parent=11 // pred_check_branch
          %235 = sbr.rel (%p233) target = $region28
        $region27: #{tpu_custom_call.1} parent=11 // pred_region
          _
        $region28: #{tpu_custom_call.1} parent=11 // pred_fallthru
          _
        // Predicated region
        $region29: #{tpu_custom_call.1} parent=11 // pred_check
          %p236 = pneg %p162
        $region30: #{tpu_custom_call.1} parent=11 // pred_check_branch
          %238 = sbr.rel (%p236) target = $region32
        $region31: #{tpu_custom_call.1} parent=11 // pred_region
          _
        $region32: #{tpu_custom_call.1} parent=11 // pred_fallthru
          _
        // Predicated region
        $region33: #{tpu_custom_call.1} parent=11 // pred_check
          %p239 = pneg %p183
        $region34: #{tpu_custom_call.1} parent=11 // pred_check_branch
          %241 = sbr.rel (%p239) target = $region36
        $region35: #{tpu_custom_call.1} parent=11 // pred_region
          _
        $region36: #{tpu_custom_call.1} parent=11 // pred_fallthru
          _
      $region12: #{tpu_custom_call.1} parent=5 // pred_fallthru
        _
      %p242 = scmp.lt.s32.totalorder %s17, 2
      // Predicated region
      $region37: #{tpu_custom_call.1} parent=5 // pred_check
        %p243 = pneg %p242
      $region38: #{tpu_custom_call.1} parent=5 // pred_check_branch
        %245 = sbr.rel (%p243) target = $region40
      $region39: #{tpu_custom_call.1} parent=5 // pred_region
        // Predicated region
        $region41: #{tpu_custom_call.1} parent=39 // pred_check
          %p246 = pneg %p51
        $region42: #{tpu_custom_call.1} parent=39 // pred_check_branch
          %248 = sbr.rel (%p246) target = $region44
        $region43: #{tpu_custom_call.1} parent=39 // pred_region
          %p249 = scmp.lt.s32.totalorder %s24, 1
          %s250 = scalar_select %p249, %s24, 1
          %p251 = scmp.lt.s32.totalorder %s25, 0
          %s252 = scalar_select %p251, %s25, 0
          %s253 = smul.addr %s250, 4
          %s254 = sadd.s32 %s252, %s253
          %s255 = smul.addr %s254, 8
          %s256 = scalar_lea.vmem %s0, %s255
        $region44: #{tpu_custom_call.1} parent=39 // pred_fallthru
          _
      $region40: #{tpu_custom_call.1} parent=5 // pred_fallthru
        _
      %p257 = scmp.le.s32.totalorder 1, %s17
      %p258 = scmp.lt.s32.totalorder %s17, 3
      %p259 = pnand %p257, %p258
      %p260 = pneg %p259
      // Predicated region
      $region45: #{tpu_custom_call.1} parent=5 // pred_check
        _
      $region46: #{tpu_custom_call.1} parent=5 // pred_check_branch
        %262 = sbr.rel (%p259) target = $region48
      $region47: #{tpu_custom_call.1} parent=5 // pred_region
        %s263 = ssub.s32 %s17, 1
        %p264 = scmp.lt.s32.totalorder %s26, 1
        %s265 = scalar_select %p264, %s26, 1
        %p266 = scmp.lt.s32.totalorder %s27, 0
        %s267 = scalar_select %p266, %s27, 0
        %s268 = smul.addr %s265, 4
        %s269 = sadd.s32 %s267, %s268
        %s270 = smul.addr %s269, 8
        %s271 = scalar_lea.vmem %s0, %s270
        %p272 = pneg %p57
        %p273 = pneg %p54
        %p274 = pneg %p78
        %p275 = pneg %p75
        %p276 = pneg %p99
        %p277 = pneg %p96
        %p278 = pneg %p120
        %p279 = pneg %p117
        %p280 = pneg %p141
        %p281 = pneg %p138
        %p282 = pneg %p162
        %p283 = pneg %p159
        %p284 = pneg %p183
        %p285 = pneg %p180
        %p286 = pneg %p209
        %p287 = pneg %p206
        %s288 = sand.u32 %s196, 1
        %s289 = scalar_lea.sflag [#allocation7], %s288
        %s290 = sand.u32 %s196, 1
        %s291 = scalar_lea.vmem [#allocation6], %s290
        %p292 = scmp.lt.s32.totalorder %s26, 1
        %s293 = scalar_select %p292, %s26, 1
        %p294 = scmp.lt.s32.totalorder %s27, 0
        %s295 = scalar_select %p294, %s27, 0
        %s296 = smul.addr %s293, 4
        %s297 = sadd.s32 %s295, %s296
        %s298 = smul.addr %s297, 8
        %s299 = scalar_lea.vmem %s0, %s298
        %p300 = scmp.eq.s32.totalorder %s27, 0
        // Predicated region
        $region49: #{tpu_custom_call.1} parent=47 // pred_check
          %p301 = pneg %p300
        $region50: #{tpu_custom_call.1} parent=47 // pred_check_branch
          %303 = sbr.rel (%p301) target = $region52
        $region51: #{tpu_custom_call.1} parent=47 // pred_region
          %vm304 = vcmask 0
          %305 = vst.msk [vmem:[#allocation2] sm:$0x1] %vm304, -inf
          %306 = vst.msk [vmem:[#allocation3] sm:$0x1] %vm304, 0.0
          %vm307 = vcmask 253952
          %308 = vst.msk [vmem:[#allocation4] sm:$0x1] %vm307, 0.0
        $region52: #{tpu_custom_call.1} parent=47 // pred_fallthru
          _
        %v309 = vld [vmem:[%s299] sm:$0xff]
        %v310 = vld [vmem:[%s299 + $0x8] sm:$0xff]
        %v311 = vld [vmem:[%s299 + $0x10] sm:$0xff]
        %v312 = vld [vmem:[%s299 + $0x18] sm:$0xff]
        %v313 = vld [vmem:[%s1] sm:$0x1]
        %s314 = sld [smem:[#allocation5]]
        %v315 = vstv %s314
        %vm316 = vcmask 261120
        %v318 = vsel %vm316, %v313, 0
        %320 = vmatprep.subr.mxu0 0.0
        %321 = vmatpush1.msra.mxu0 %v309
        %322 = vmatprep.subr.mxu0 0.0
        %323 = vmatpush1.msra.mxu0 %v310
        %324 = vmatprep.subr.mxu0 0.0
        %325 = vmatpush1.msra.mxu0 %v311
        %326 = vmatprep.subr.mxu0 0.0
        %327 = vmatpush1.msra.mxu0 %v312
        %328 = vmatprep.subr.mxu0 0.0
        %329 = vmatpush1.msra.mxu0 0.0
        %330 = vmatprep.subr.mxu0 0.0
        %331 = vmatpush1.msra.mxu0 0.0
        %332 = vmatprep.subr.mxu0 0.0
        %333 = vmatpush1.msra.mxu0 0.0
        %334 = vmatprep.subr.mxu0 0.0
        %335 = vmatpush1.msra.mxu0 0.0
        %336 = vmatprep.subr.mxu0 0.0
        %337 = vmatpush1.msra.mxu0 0.0
        %338 = vmatprep.subr.mxu0 0.0
        %339 = vmatpush1.msra.mxu0 0.0
        %340 = vmatprep.subr.mxu0 0.0
        %341 = vmatpush1.msra.mxu0 0.0
        %342 = vmatprep.subr.mxu0 0.0
        %343 = vmatpush1.msra.mxu0 0.0
        %344 = vmatprep.subr.mxu0 0.0
        %345 = vmatpush1.msra.mxu0 0.0
        %346 = vmatprep.subr.mxu0 0.0
        %347 = vmatpush1.msra.mxu0 0.0
        %348 = vmatprep.subr.mxu0 0.0
        %349 = vmatpush1.msra.mxu0 0.0
        %350 = vmatprep.subr.mxu0 0.0
        %351 = vmatpush1.msra.mxu0 0.0
        %352 = vmatprep.subr.mxu0 0.0
        %353 = vmatpush1.msra.mxu0 0.0
        %354 = vmatprep.subr.mxu0 0.0
        %355 = vmatpush1.msra.mxu0 0.0
        %356 = vmatprep.subr.mxu0 0.0
        %357 = vmatpush1.msra.mxu0 0.0
        %358 = vmatprep.subr.mxu0 0.0
        %359 = vmatpush1.msra.mxu0 0.0
        %360 = vmatprep.subr.mxu0 0.0
        %361 = vmatpush1.msra.mxu0 0.0
        %362 = vmatprep.subr.mxu0 0.0
        %363 = vmatpush1.msra.mxu0 0.0
        %364 = vmatprep.subr.mxu0 0.0
        %365 = vmatpush1.msra.mxu0 0.0
        %366 = vmatprep.subr.mxu0 0.0
        %367 = vmatpush1.msra.mxu0 0.0
        %368 = vmatprep.subr.mxu0 0.0
        %369 = vmatpush1.msra.mxu0 0.0
        %370 = vmatprep.subr.mxu0 0.0
        %371 = vmatpush1.msra.mxu0 0.0
        %372 = vmatprep.subr.mxu0 0.0
        %373 = vmatpush1.msra.mxu0 0.0
        %374 = vmatprep.subr.mxu0 0.0
        %375 = vmatpush1.msra.mxu0 0.0
        %376 = vmatprep.subr.mxu0 0.0
        %377 = vmatpush1.msra.mxu0 0.0
        %378 = vmatprep.subr.mxu0 0.0
        %379 = vmatpush1.msra.mxu0 0.0
        %380 = vmatprep.subr.mxu0 0.0
        %381 = vmatpush1.msra.mxu0 0.0
        %382 = vmatprep.subr.mxu0 0.0
        %383 = vmatpush1.msra.mxu0 0.0
        %384 = vmatprep.mubr.f32.mxu0 0.0
        %385 = vmatmul.mubr.f32.gmra.mrb[0].mxu0 %v318
        %v386 = vpop.f32.mrb[0].mxu0
        %v387 = vadd.f32 %v315, %v386
        %v388 = vpop.f32.mrb[0].mxu0
        %389 = vdwg.mxu0
        %v390 = vmax.f32 %v387, 0.0
        %v391 = vld [vmem:[#allocation2] sm:$0x1]
        %vm392 = vcmask 122880
        %v393 = vsel %vm392, %v390, -inf
        %394 = vmax.xlane.f32.xlu0 %v393
        %v395 = vpop.xlane.xlu0 %394
        %v396 = vmax.f32 %v391, %v395
        %v397 = vsub.f32 %v391, %v396
        %v398 = vmul.f32 %v397, 1.442695
        %v399 = vpow.pop %v398
        %401 = vset.pattern.permute.xlu0 0
        %402 = vperm.xlu0 %401, %v396
        %v403 = vpop.permute.xlu0 %402
        %v405 = vlaneseq
        %v406 = vshrl.u32 %v405, 7
        %v407 = vsub.s32 0, %v406
        %v408 = vrot.slane %v403, %v407
        %v409 = vsub.f32 %v390, %v408
        %v410 = vmul.f32 %v409, 1.442695
        %v411 = vpow.pop %v410
        %v412 = vld [vmem:[#allocation3] sm:$0x1]
        %v413 = vmul.f32 %v399, %v412
        %v414 = vsel %vm392, %v411, 0.0
        %415 = vadd.xlane.f32.xlu0 %v414
        %v416 = vpop.xlane.xlu0 %415
        %v417 = vadd.f32 %v413, %v416
        %vm418 = vcmask 0
        %419 = vst.msk [vmem:[#allocation3] sm:$0x1] %vm418, %v417
        %v420 = vld [vmem:[#allocation4] sm:$0x1]
        %422 = vset.pattern.permute.xlu0 0
        %423 = vperm.xlu0 %422, %v399
        %v424 = vpop.permute.xlu0 %423
        %v426 = vlaneseq
        %v427 = vshrl.u32 %v426, 7
        %v428 = vsub.s32 0, %v427
        %v429 = vrot.slane %v424, %v428
        %v430 = vmul.f32 %v429, %v420
        %vm431 = vcmask 130048
        %v433 = vsel %vm431, %v411, 0
        %v436 = vsel %vm431, %v309, 0
        %v439 = vsel %vm431, %v310, 0
        %v442 = vsel %vm431, %v311, 0
        %v445 = vsel %vm431, %v312, 0
        %447 = vmatprep.subr.mxu0 0.0
        %448 = vmatpush1.xpose.msra.mxu0 %v436
        %449 = vmatprep.subr.mxu0 0.0
        %450 = vmatpush1.xpose.msra.mxu0 %v439
        %451 = vmatprep.subr.mxu0 0.0
        %452 = vmatpush1.xpose.msra.mxu0 %v442
        %453 = vmatprep.subr.mxu0 0.0
        %454 = vmatpush1.xpose.msra.mxu0 %v445
        %455 = vmatprep.subr.mxu0 0.0
        %456 = vmatpush1.xpose.msra.mxu0 0.0
        %457 = vmatprep.subr.mxu0 0.0
        %458 = vmatpush1.xpose.msra.mxu0 0.0
        %459 = vmatprep.subr.mxu0 0.0
        %460 = vmatpush1.xpose.msra.mxu0 0.0
        %461 = vmatprep.subr.mxu0 0.0
        %462 = vmatpush1.xpose.msra.mxu0 0.0
        %463 = vmatprep.subr.mxu0 0.0
        %464 = vmatpush1.xpose.msra.mxu0 0.0
        %465 = vmatprep.subr.mxu0 0.0
        %466 = vmatpush1.xpose.msra.mxu0 0.0
        %467 = vmatprep.subr.mxu0 0.0
        %468 = vmatpush1.xpose.msra.mxu0 0.0
        %469 = vmatprep.subr.mxu0 0.0
        %470 = vmatpush1.xpose.msra.mxu0 0.0
        %471 = vmatprep.subr.mxu0 0.0
        %472 = vmatpush1.xpose.msra.mxu0 0.0
        %473 = vmatprep.subr.mxu0 0.0
        %474 = vmatpush1.xpose.msra.mxu0 0.0
        %475 = vmatprep.subr.mxu0 0.0
        %476 = vmatpush1.xpose.msra.mxu0 0.0
        %477 = vmatprep.subr.mxu0 0.0
        %478 = vmatpush1.xpose.msra.mxu0 0.0
        %479 = vmatprep.subr.mxu0 0.0
        %480 = vmatpush1.xpose.msra.mxu0 0.0
        %481 = vmatprep.subr.mxu0 0.0
        %482 = vmatpush1.xpose.msra.mxu0 0.0
        %483 = vmatprep.subr.mxu0 0.0
        %484 = vmatpush1.xpose.msra.mxu0 0.0
        %485 = vmatprep.subr.mxu0 0.0
        %486 = vmatpush1.xpose.msra.mxu0 0.0
        %487 = vmatprep.subr.mxu0 0.0
        %488 = vmatpush1.xpose.msra.mxu0 0.0
        %489 = vmatprep.subr.mxu0 0.0
        %490 = vmatpush1.xpose.msra.mxu0 0.0
        %491 = vmatprep.subr.mxu0 0.0
        %492 = vmatpush1.xpose.msra.mxu0 0.0
        %493 = vmatprep.subr.mxu0 0.0
        %494 = vmatpush1.xpose.msra.mxu0 0.0
        %495 = vmatprep.subr.mxu0 0.0
        %496 = vmatpush1.xpose.msra.mxu0 0.0
        %497 = vmatprep.subr.mxu0 0.0
        %498 = vmatpush1.xpose.msra.mxu0 0.0
        %499 = vmatprep.subr.mxu0 0.0
        %500 = vmatpush1.xpose.msra.mxu0 0.0
        %501 = vmatprep.subr.mxu0 0.0
        %502 = vmatpush1.xpose.msra.mxu0 0.0
        %503 = vmatprep.subr.mxu0 0.0
        %504 = vmatpush1.xpose.msra.mxu0 0.0
        %505 = vmatprep.subr.mxu0 0.0
        %506 = vmatpush1.xpose.msra.mxu0 0.0
        %507 = vmatprep.subr.mxu0 0.0
        %508 = vmatpush1.xpose.msra.mxu0 0.0
        %509 = vmatprep.subr.mxu0 0.0
        %510 = vmatpush1.xpose.msra.mxu0 0.0
        %511 = vmatprep.mubr.f32.mxu0 0.0
        %512 = vmatmul.mubr.f32.gmra.mrb[0].mxu0 %v433
        %v513 = vpop.f32.mrb[0].mxu0
        %v514 = vadd.f32 0.0, %v513
        %v515 = vpop.f32.mrb[0].mxu0
        %516 = vdwg.mxu0
        %v517 = vadd.f32 %v430, %v514
        %vm518 = vcmask 253952
        %519 = vst.msk [vmem:[#allocation4] sm:$0x1] %vm518, %v517
        %520 = vst.msk [vmem:[#allocation2] sm:$0x1] %vm418, %v396
        // Predicated region
        $region53: #{tpu_custom_call.1} parent=47 // pred_check
          %p521 = pneg %p300
        $region54: #{tpu_custom_call.1} parent=47 // pred_check_branch
          %523 = sbr.rel (%p521) target = $region56
        $region55: #{tpu_custom_call.1} parent=47 // pred_region
          %v524 = vld [vmem:[#allocation4] sm:$0x1]
          %v525 = vld [vmem:[#allocation3] sm:$0x1]
          %527 = vset.pattern.permute.xlu0 0
          %528 = vperm.xlu0 %527, %v525
          %v529 = vpop.permute.xlu0 %528
          %v531 = vlaneseq
          %v532 = vshrl.u32 %v531, 7
          %v533 = vsub.s32 0, %v532
          %v534 = vrot.slane %v529, %v533
          %v535 = vrcp.pop %v534
          %v536 = vmul.f32 %v524, %v535
          %v537 = vld [vmem:[%s3] sm:$0xff]
          %v538 = vld [vmem:[%s3 + $0x8] sm:$0xff]
          %v539 = vld [vmem:[%s3 + $0x10] sm:$0xff]
          %v540 = vld [vmem:[%s3 + $0x18] sm:$0xff]
          %v542 = vsel %vm316, %v536, 0
          %544 = vmatprep.subr.mxu0 0.0
          %545 = vmatpush1.msra.mxu0 %v537
          %546 = vmatprep.subr.mxu0 0.0
          %547 = vmatpush1.msra.mxu0 %v538
          %548 = vmatprep.subr.mxu0 0.0
          %549 = vmatpush1.msra.mxu0 %v539
          %550 = vmatprep.subr.mxu0 0.0
          %551 = vmatpush1.msra.mxu0 %v540
          %552 = vmatprep.subr.mxu0 0.0
          %553 = vmatpush1.msra.mxu0 0.0
          %554 = vmatprep.subr.mxu0 0.0
          %555 = vmatpush1.msra.mxu0 0.0
          %556 = vmatprep.subr.mxu0 0.0
          %557 = vmatpush1.msra.mxu0 0.0
          %558 = vmatprep.subr.mxu0 0.0
          %559 = vmatpush1.msra.mxu0 0.0
          %560 = vmatprep.subr.mxu0 0.0
          %561 = vmatpush1.msra.mxu0 0.0
          %562 = vmatprep.subr.mxu0 0.0
          %563 = vmatpush1.msra.mxu0 0.0
          %564 = vmatprep.subr.mxu0 0.0
          %565 = vmatpush1.msra.mxu0 0.0
          %566 = vmatprep.subr.mxu0 0.0
          %567 = vmatpush1.msra.mxu0 0.0
          %568 = vmatprep.subr.mxu0 0.0
          %569 = vmatpush1.msra.mxu0 0.0
          %570 = vmatprep.subr.mxu0 0.0
          %571 = vmatpush1.msra.mxu0 0.0
          %572 = vmatprep.subr.mxu0 0.0
          %573 = vmatpush1.msra.mxu0 0.0
          %574 = vmatprep.subr.mxu0 0.0
          %575 = vmatpush1.msra.mxu0 0.0
          %576 = vmatprep.subr.mxu0 0.0
          %577 = vmatpush1.msra.mxu0 0.0
          %578 = vmatprep.subr.mxu0 0.0
          %579 = vmatpush1.msra.mxu0 0.0
          %580 = vmatprep.subr.mxu0 0.0
          %581 = vmatpush1.msra.mxu0 0.0
          %582 = vmatprep.subr.mxu0 0.0
          %583 = vmatpush1.msra.mxu0 0.0
          %584 = vmatprep.subr.mxu0 0.0
          %585 = vmatpush1.msra.mxu0 0.0
          %586 = vmatprep.subr.mxu0 0.0
          %587 = vmatpush1.msra.mxu0 0.0
          %588 = vmatprep.subr.mxu0 0.0
          %589 = vmatpush1.msra.mxu0 0.0
          %590 = vmatprep.subr.mxu0 0.0
          %591 = vmatpush1.msra.mxu0 0.0
          %592 = vmatprep.subr.mxu0 0.0
          %593 = vmatpush1.msra.mxu0 0.0
          %594 = vmatprep.subr.mxu0 0.0
          %595 = vmatpush1.msra.mxu0 0.0
          %596 = vmatprep.subr.mxu0 0.0
          %597 = vmatpush1.msra.mxu0 0.0
          %598 = vmatprep.subr.mxu0 0.0
          %599 = vmatpush1.msra.mxu0 0.0
          %600 = vmatprep.subr.mxu0 0.0
          %601 = vmatpush1.msra.mxu0 0.0
          %602 = vmatprep.subr.mxu0 0.0
          %603 = vmatpush1.msra.mxu0 0.0
          %604 = vmatprep.subr.mxu0 0.0
          %605 = vmatpush1.msra.mxu0 0.0
          %606 = vmatprep.subr.mxu0 0.0
          %607 = vmatpush1.msra.mxu0 0.0
          %608 = vmatprep.mubr.f32.mxu0 0.0
          %609 = vmatmul.mubr.f32.gmra.mrb[0].mxu0 %v542
          %v610 = vpop.f32.mrb[0].mxu0
          %v611 = vadd.f32 0.0, %v610
          %v612 = vpop.f32.mrb[0].mxu0
          %613 = vdwg.mxu0
          %v614 = vsel %vm518, %v611, 0.0
          %615 = vadd.xlane.f32.xlu0 %v614
          %v616 = vpop.xlane.xlu0 %615
          %v617 = vrcp.pop 32.0
          %v618 = vmul.f32 %v616, %v617
          %v619 = vsub.f32 %v611, %v618
          %v620 = vmul.f32 %v619, %v619
          %v621 = vsel %vm518, %v620, 0.0
          %622 = vadd.xlane.f32.xlu0 %v621
          %v623 = vpop.xlane.xlu0 %622
          %v624 = vmul.f32 %v623, %v617
          %v625 = vadd.f32 %v624, 1e-05
          %v626 = vrsqrt.pop %v625
          %v627 = vmul.f32 %v619, %v626
          %v628 = vld [vmem:[%s4] sm:$0x1]
          %v629 = vmul.f32 %v627, %v628
          %v630 = vld [vmem:[%s5] sm:$0x1]
          %v631 = vadd.f32 %v629, %v630
          %v632 = vmax.f32 %v631, 0.0
          %v633 = vld [vmem:[%s6] sm:$0xff]
          %v634 = vld [vmem:[%s6 + $0x8] sm:$0xff]
          %v635 = vld [vmem:[%s6 + $0x10] sm:$0xff]
          %v636 = vld [vmem:[%s6 + $0x18] sm:$0xff]
          %v638 = vsel %vm316, %v632, 0
          %640 = vmatprep.subr.mxu0 0.0
          %641 = vmatpush1.msra.mxu0 %v633
          %642 = vmatprep.subr.mxu0 0.0
          %643 = vmatpush1.msra.mxu0 %v634
          %644 = vmatprep.subr.mxu0 0.0
          %645 = vmatpush1.msra.mxu0 %v635
          %646 = vmatprep.subr.mxu0 0.0
          %647 = vmatpush1.msra.mxu0 %v636
          %648 = vmatprep.subr.mxu0 0.0
          %649 = vmatpush1.msra.mxu0 0.0
          %650 = vmatprep.subr.mxu0 0.0
          %651 = vmatpush1.msra.mxu0 0.0
          %652 = vmatprep.subr.mxu0 0.0
          %653 = vmatpush1.msra.mxu0 0.0
          %654 = vmatprep.subr.mxu0 0.0
          %655 = vmatpush1.msra.mxu0 0.0
          %656 = vmatprep.subr.mxu0 0.0
          %657 = vmatpush1.msra.mxu0 0.0
          %658 = vmatprep.subr.mxu0 0.0
          %659 = vmatpush1.msra.mxu0 0.0
          %660 = vmatprep.subr.mxu0 0.0
          %661 = vmatpush1.msra.mxu0 0.0
          %662 = vmatprep.subr.mxu0 0.0
          %663 = vmatpush1.msra.mxu0 0.0
          %664 = vmatprep.subr.mxu0 0.0
          %665 = vmatpush1.msra.mxu0 0.0
          %666 = vmatprep.subr.mxu0 0.0
          %667 = vmatpush1.msra.mxu0 0.0
          %668 = vmatprep.subr.mxu0 0.0
          %669 = vmatpush1.msra.mxu0 0.0
          %670 = vmatprep.subr.mxu0 0.0
          %671 = vmatpush1.msra.mxu0 0.0
          %672 = vmatprep.subr.mxu0 0.0
          %673 = vmatpush1.msra.mxu0 0.0
          %674 = vmatprep.subr.mxu0 0.0
          %675 = vmatpush1.msra.mxu0 0.0
          %676 = vmatprep.subr.mxu0 0.0
          %677 = vmatpush1.msra.mxu0 0.0
          %678 = vmatprep.subr.mxu0 0.0
          %679 = vmatpush1.msra.mxu0 0.0
          %680 = vmatprep.subr.mxu0 0.0
          %681 = vmatpush1.msra.mxu0 0.0
          %682 = vmatprep.subr.mxu0 0.0
          %683 = vmatpush1.msra.mxu0 0.0
          %684 = vmatprep.subr.mxu0 0.0
          %685 = vmatpush1.msra.mxu0 0.0
          %686 = vmatprep.subr.mxu0 0.0
          %687 = vmatpush1.msra.mxu0 0.0
          %688 = vmatprep.subr.mxu0 0.0
          %689 = vmatpush1.msra.mxu0 0.0
          %690 = vmatprep.subr.mxu0 0.0
          %691 = vmatpush1.msra.mxu0 0.0
          %692 = vmatprep.subr.mxu0 0.0
          %693 = vmatpush1.msra.mxu0 0.0
          %694 = vmatprep.subr.mxu0 0.0
          %695 = vmatpush1.msra.mxu0 0.0
          %696 = vmatprep.subr.mxu0 0.0
          %697 = vmatpush1.msra.mxu0 0.0
          %698 = vmatprep.subr.mxu0 0.0
          %699 = vmatpush1.msra.mxu0 0.0
          %700 = vmatprep.subr.mxu0 0.0
          %701 = vmatpush1.msra.mxu0 0.0
          %702 = vmatprep.subr.mxu0 0.0
          %703 = vmatpush1.msra.mxu0 0.0
          %704 = vmatprep.mubr.f32.mxu0 0.0
          %705 = vmatmul.mubr.f32.gmra.mrb[0].mxu0 %v638
          %v706 = vpop.f32.mrb[0].mxu0
          %v707 = vadd.f32 0.0, %v706
          %v708 = vpop.f32.mrb[0].mxu0
          %709 = vdwg.mxu0
          %710 = vst.msk [vmem:[%s291] sm:$0x1] %vm518, %v707
        $region56: #{tpu_custom_call.1} parent=47 // pred_fallthru
          _
        %s711 = sand.u32 %s196, 1
        %s712 = scalar_lea.sflag [#allocation7], %s711
        %s713 = sand.u32 %s196, 1
        %s714 = scalar_lea.vmem [#allocation6], %s713
        // Predicated region
        $region57: #{tpu_custom_call.1} parent=47 // pred_check
          %p715 = pneg %p206
        $region58: #{tpu_custom_call.1} parent=47 // pred_check_branch
          %717 = sbr.rel (%p715) target = $region60
        $region59: #{tpu_custom_call.1} parent=47 // pred_region
          %s719 = ssub.s32 16, 16
          %720 = vsyncadd %s712, %s719
          %s721 = smul.addr %s26, 16
          %s722 = scalar_lea.hbm %s7, %s721
          %s724 = sshll.u32 %s714, 4
          %s725 = int_to_ptr.vmem [resolvable:$true] %s724
          %727 = dma.vmem_to_hbm [thread:$0]  %s725, 16, %s722, %s712
        $region60: #{tpu_custom_call.1} parent=47 // pred_fallthru
          _
      $region48: #{tpu_custom_call.1} parent=5 // pred_fallthru
        _
      %p728 = scmp.le.s32.totalorder 2, %s17
      // Predicated region
      $region61: #{tpu_custom_call.1} parent=5 // pred_check
        %p729 = pneg %p728
      $region62: #{tpu_custom_call.1} parent=5 // pred_check_branch
        %731 = sbr.rel (%p729) target = $region64
      $region63: #{tpu_custom_call.1} parent=5 // pred_region
        %s732 = ssub.s32 %s17, 2
        // Predicated region
        $region65: #{tpu_custom_call.1} parent=63 // pred_check
          %p733 = pneg %p212
        $region66: #{tpu_custom_call.1} parent=63 // pred_check_branch
          %735 = sbr.rel (%p733) target = $region68
        $region67: #{tpu_custom_call.1} parent=63 // pred_region
          %s736 = sand.u32 %s197, 1
          %s737 = scalar_lea.sflag [#allocation7], %s736
          %s738 = sand.u32 %s197, 1
          %s739 = scalar_lea.vmem [#allocation6], %s738
          %740 = dma.done %s737, 16
        $region68: #{tpu_custom_call.1} parent=63 // pred_fallthru
          _
      $region64: #{tpu_custom_call.1} parent=5 // pred_fallthru
        _
    $region6: #{tpu_custom_call.1} parent=1 // loop_footer
      %s21 = sadd.s32 1, %s17
    $region7: #{tpu_custom_call.1} parent=1 // loop_footer_branch
      %16 = sbr.rel target = $region3
    $region8: #{tpu_custom_call.1} parent=1 // loop_exit
      _
    %741 = vsyncpa [#allocation7], 1
    %s742 = scalar_lea.sflag [#allocation7], 1
    %743 = vsyncpa %s742, 1

</llo_original>
